<compile_context>
chip_gen: v5e
topology: v5e:2x2
jax: 0.10.0
libtpu: 0.0.40
codegen_flags: <defaults>
</compile_context>

<pallas_src>
import functools

import jax
import jax.numpy as jnp
from jax.experimental import pallas as pl
from jax.experimental.pallas import tpu as pltpu

C_IN = 1
C_OUT = 9
KERNEL_SIZE = 2
RADIUS = 0.1
NUM_CELLS = KERNEL_SIZE * 8     # Conv1d kernel length = 16

_LANE = 128                     # lane-dense padded output width
_SUBLANE = 8


def _round_up(v, m):
    return ((v + m - 1) // m) * m


def _pointwise_conv_kernel(x_ref, y_ref, a_ref, w_ref, b_ref, o_ref,
                           pooled_ref, *, kernel_size, radius, c_in, n_pad):
    # x_ref, y_ref: (TB, N_pad)      a_ref: (TB, c_in*N_pad) (channel-major)
    # w_ref: (K_pad, c_out_pad)      b_ref: (1, c_out_pad)
    # o_ref: (TB, c_out_pad)         pooled_ref: (TB, K_pad) VMEM scratch
    x = x_ref[...]
    y = y_ref[...]

    # --- 8 angular sectors (45 deg each) as boolean masks, compares only ----
    ax = jnp.abs(x)
    ay = jnp.abs(y)
    xe = x >= 0.0
    ye = y >= 0.0
    xn = jnp.logical_not(xe)
    yn = jnp.logical_not(ye)
    big = ax >= ay
    sml = jnp.logical_not(big)
    sectors = (
        xe & ye & big,   # 0
        xe & ye & sml,   # 1
        xn & ye & sml,   # 2
        xn & ye & big,   # 3
        xn & yn & big,   # 4
        xn & yn & sml,   # 5
        xe & yn & sml,   # 6
        xe & yn & big,   # 7
    )

    # --- kernel_size radial rings inside `radius` via squared compares ------
    # (no sqrt / divide / floor; padded sentinel points fail `valid`).
    r2 = x * x + y * y
    valid = r2 <= radius * radius
    rw = radius / kernel_size
    rings = []
    for r in range(kernel_size):
        if kernel_size == 1:
            m = valid
        elif r == 0:
            m = r2 < rw * rw
        elif r == kernel_size - 1:
            m = (r2 >= (r * rw) ** 2) & valid
        else:
            m = (r2 >= (r * rw) ** 2) & (r2 < ((r + 1) * rw) ** 2)
        rings.append(m)

    # --- mean-pool each cell into the small (TB, K_pad) buffer --------------
    pooled_ref[...] = jnp.zeros_like(pooled_ref)   # also zeroes padding cols
    for q in range(8):
        for r in range(kernel_size):
            mask = sectors[q] & rings[r]                              # (TB,Np)
            cnt = jnp.sum(jnp.where(mask, 1.0, 0.0), axis=-1, keepdims=True)
            inv = pl.reciprocal(jnp.maximum(cnt, 1.0), approx=False)  # (TB,1)
            cell = q * kernel_size + r
            for c in range(c_in):
                a_c = a_ref[:, c * n_pad:(c + 1) * n_pad]             # (TB,Np)
                s = jnp.sum(jnp.where(mask, a_c, 0.0), axis=-1,
                            keepdims=True)
                col = cell * c_in + c
                pooled_ref[:, col:col + 1] = s * inv

    # --- one MXU contraction finishes the folded Conv1d ---------------------
    o_ref[...] = jnp.dot(pooled_ref[...], w_ref[...],
                         preferred_element_type=jnp.float32) + b_ref[...]


def pointwise_convolution_x(points, attributes, weight, bias, *,
                            kernel_size=KERNEL_SIZE, radius=RADIUS):
    B, N, two = points.shape
    assert two == 2
    c_out, c_in, k = weight.shape
    assert k == kernel_size * 8
    assert attributes.shape == (B, N, c_in)
    num_cells = k
    c_out_pad = _LANE

    # ---- layout: N in the lane dimension, padded to a multiple of 128 ------
    n_pad = _round_up(N, _LANE)
    sentinel = 10.0 * radius                      # well outside the radius
    x = points[:, :, 0].astype(jnp.float32)                          # (B, N)
    y = points[:, :, 1].astype(jnp.float32)                          # (B, N)
    attrs = jnp.transpose(attributes, (0, 2, 1)).astype(jnp.float32)  # (B,C,N)
    if n_pad != N:
        x = jnp.pad(x, ((0, 0), (0, n_pad - N)), constant_values=sentinel)
        y = jnp.pad(y, ((0, 0), (0, n_pad - N)), constant_values=sentinel)
        attrs = jnp.pad(attrs, ((0, 0), (0, 0), (0, n_pad - N)))
    attrs = attrs.reshape(B, c_in * n_pad)

    # ---- fold Conv1d: out[b,o] = bias[o] + sum_{k,c} W[o,c,k]*grid[b,k,c] --
    k_total = num_cells * c_in
    k_pad = _round_up(k_total, _SUBLANE)
    w2 = jnp.transpose(weight, (0, 2, 1)).reshape(c_out, k_total)
    w_pad = jnp.zeros((k_pad, c_out_pad), jnp.float32)
    w_pad = w_pad.at[:k_total, :c_out].set(w2.T.astype(jnp.float32))
    b_pad = jnp.zeros((1, c_out_pad), jnp.float32)
    b_pad = b_pad.at[0, :c_out].set(bias.astype(jnp.float32))

    # ---- batch tiling: modest tile, >=2 grid steps when B allows (v7x) -----
    TB = max(_SUBLANE, min(128, _round_up(-(-B // 2), _SUBLANE)))
    B_pad = _round_up(B, TB)
    if B_pad != B:
        pad = B_pad - B
        x = jnp.pad(x, ((0, pad), (0, 0)))            # dead rows, sliced off
        y = jnp.pad(y, ((0, pad), (0, 0)))
        attrs = jnp.pad(attrs, ((0, pad), (0, 0)))

    # ---- VMEM footprint (double-buffered); only raise limit if needed ------
    bytes_f32 = 4
    per_step = (2 * (2 * TB * n_pad)                 # x, y (double-buffered)
                + 2 * (TB * c_in * n_pad)            # attrs
                + 2 * (TB * c_out_pad)               # output
                + 2 * (k_pad * c_out_pad + c_out_pad)   # weight + bias
                + TB * k_pad) * bytes_f32            # pooled scratch
    cp_kwargs = dict(dimension_semantics=("parallel",))
    if per_step > (16 << 20):                        # v5e default scoped VMEM
        cp_kwargs["vmem_limit_bytes"] = int(min(2 * per_step, 64 << 20))
    compiler_params = pltpu.CompilerParams(**cp_kwargs)

    kernel = functools.partial(
        _pointwise_conv_kernel,
        kernel_size=kernel_size, radius=radius, c_in=c_in, n_pad=n_pad)

    out_pad = pl.pallas_call(
        kernel,
        out_shape=jax.ShapeDtypeStruct((B_pad, c_out_pad), jnp.float32),
        grid_spec=pltpu.PrefetchScalarGridSpec(
            num_scalar_prefetch=0,
            grid=(B_pad // TB,),
            in_specs=[
                pl.BlockSpec((TB, n_pad), lambda i: (i, 0)),            # x
                pl.BlockSpec((TB, n_pad), lambda i: (i, 0)),            # y
                pl.BlockSpec((TB, c_in * n_pad), lambda i: (i, 0)),     # attrs
                pl.BlockSpec((k_pad, c_out_pad), lambda i: (0, 0)),     # weight
                pl.BlockSpec((1, c_out_pad), lambda i: (0, 0)),         # bias
            ],
            out_specs=pl.BlockSpec((TB, c_out_pad), lambda i: (i, 0)),
            scratch_shapes=[pltpu.VMEM((TB, k_pad), jnp.float32)],
        ),
        compiler_params=compiler_params,
    )(x, y, attrs, w_pad, b_pad)

    return out_pad[:B, :c_out]


def _reference(points, attributes, weight, bias, *, kernel_size, radius):
    """Pure-JAX reference with the same assumed pointConv semantics."""
    x = points[..., 0]
    y = points[..., 1]
    ax, ay = jnp.abs(x), jnp.abs(y)
    xe, ye, big = x >= 0.0, y >= 0.0, ax >= ay
    octant = jnp.where(
        xe & ye, jnp.where(big, 0, 1),
        jnp.where((~xe) & ye, jnp.where(big, 3, 2),
                  jnp.where((~xe) & (~ye), jnp.where(big, 4, 5),
                            jnp.where(big, 7, 6)))).astype(jnp.int32)
    r2 = x * x + y * y
    ring_width = radius / kernel_size
    rbin = jnp.zeros_like(octant)
    for i in range(1, kernel_size):
        rbin = rbin + (r2 >= (i * ring_width) ** 2).astype(jnp.int32)
    valid = r2 <= radius * radius
    cell = jnp.where(valid, octant * kernel_size + rbin, -1)          # (B, N)
    k = kernel_size * 8
    onehot = (cell[..., None] == jnp.arange(k)).astype(jnp.float32)   # (B,N,K)
    grid = jnp.einsum('bnk,bnc->bkc', onehot, attributes)             # (B,K,C)
    counts = jnp.sum(onehot, axis=1)[..., None]                       # (B,K,1)
    grid = grid / jnp.maximum(counts, 1.0)
    return jnp.einsum('bkc,ock->bo', grid, weight) + bias[None, :]


if __name__ == "__main__":
    key = jax.random.PRNGKey(0)
    kp, ka, kw, kb = jax.random.split(key, 4)

    B, N = 2, 64
    # Local point offsets around the query point (some inside, some outside
    # the 0.1 kernel radius) and per-point attributes.
    points = jax.random.uniform(kp, (B, N, 2), jnp.float32,
                                minval=-0.12, maxval=0.12)
    attributes = jax.random.normal(ka, (B, N, C_IN), dtype=jnp.float32)

    # Deterministic Conv1d-style init (U(-1/sqrt(fan_in), 1/sqrt(fan_in))).
    fan_in = C_IN * NUM_CELLS
    bound = 1.0 / (fan_in ** 0.5)
    weight = jax.random.uniform(kw, (C_OUT, C_IN, NUM_CELLS), jnp.float32,
                                minval=-bound, maxval=bound)
    bias = jax.random.uniform(kb, (C_OUT,), jnp.float32,
                              minval=-bound, maxval=bound)

    out = pointwise_convolution_x(points, attributes, weight, bias)
    out = jax.block_until_ready(out)
    assert out.shape == (B, C_OUT) and out.dtype == jnp.float32

    ref = _reference(points, attributes, weight, bias,
                     kernel_size=KERNEL_SIZE, radius=RADIUS)
    # Exact reciprocal in the kernel -> tight agreement with the reference.
    assert jnp.allclose(out, ref, atol=1e-4, rtol=1e-4)
    print("KERNEL_OK")
</pallas_src>

<mosaic_0001>
module attributes {stable_mosaic.version = 11 : i64} {
  func.func @_pointwise_conv_kernel(%arg0: i32, %arg1: memref<8x128xf32, #tpu.memory_space<vmem>>, %arg2: memref<8x128xf32, #tpu.memory_space<vmem>>, %arg3: memref<8x128xf32, #tpu.memory_space<vmem>>, %arg4: memref<16x128xf32, #tpu.memory_space<vmem>>, %arg5: memref<1x128xf32, #tpu.memory_space<vmem>>, %arg6: memref<8x128xf32, #tpu.memory_space<vmem>>, %arg7: memref<8x16xf32, #tpu.memory_space<vmem>>) attributes {dimension_semantics = [#tpu.dimension_semantics<parallel>], iteration_bounds = array<i64: 1>, scalar_prefetch = 0 : i64, scratch_operands = 1 : i64, tpu.core_type = #tpu.core_type<tc>, window_params = [{transform_indices = @transform_0, window_bounds = array<i64: 8, 128>}, {transform_indices = @transform_1, window_bounds = array<i64: 8, 128>}, {transform_indices = @transform_2, window_bounds = array<i64: 8, 128>}, {pipeline_mode = #tpu.pipeline_mode<synchronous>, transform_indices = @transform_3, window_bounds = array<i64: 16, 128>}, {pipeline_mode = #tpu.pipeline_mode<synchronous>, transform_indices = @transform_4, window_bounds = array<i64: 1, 128>}, {transform_indices = @transform_5, window_bounds = array<i64: 8, 128>}]} {
    %c0 = arith.constant 0 : index
    %c0_0 = arith.constant 0 : index
    %0 = vector.load %arg1[%c0, %c0_0] : memref<8x128xf32, #tpu.memory_space<vmem>>, vector<8x128xf32>
    %c0_1 = arith.constant 0 : index
    %c0_2 = arith.constant 0 : index
    %1 = vector.load %arg2[%c0_1, %c0_2] : memref<8x128xf32, #tpu.memory_space<vmem>>, vector<8x128xf32>
    %2 = math.absf %0 : vector<8x128xf32>
    %3 = math.absf %1 : vector<8x128xf32>
    %cst = arith.constant 0.000000e+00 : f32
    %4 = vector.broadcast %cst : f32 to vector<8x128xf32>
    %5 = arith.cmpf oge, %0, %4 : vector<8x128xf32>
    %cst_3 = arith.constant 0.000000e+00 : f32
    %6 = vector.broadcast %cst_3 : f32 to vector<8x128xf32>
    %7 = arith.cmpf oge, %1, %6 : vector<8x128xf32>
    %cst_4 = arith.constant dense<true> : vector<8x128xi1>
    %8 = arith.xori %5, %cst_4 : vector<8x128xi1>
    %cst_5 = arith.constant dense<true> : vector<8x128xi1>
    %9 = arith.xori %7, %cst_5 : vector<8x128xi1>
    %10 = arith.cmpf oge, %2, %3 : vector<8x128xf32>
    %cst_6 = arith.constant dense<true> : vector<8x128xi1>
    %11 = arith.xori %10, %cst_6 : vector<8x128xi1>
    %12 = arith.andi %5, %7 : vector<8x128xi1>
    %13 = arith.andi %12, %10 : vector<8x128xi1>
    %14 = arith.andi %5, %7 : vector<8x128xi1>
    %15 = arith.andi %14, %11 : vector<8x128xi1>
    %16 = arith.andi %8, %7 : vector<8x128xi1>
    %17 = arith.andi %16, %11 : vector<8x128xi1>
    %18 = arith.andi %8, %7 : vector<8x128xi1>
    %19 = arith.andi %18, %10 : vector<8x128xi1>
    %20 = arith.andi %8, %9 : vector<8x128xi1>
    %21 = arith.andi %20, %10 : vector<8x128xi1>
    %22 = arith.andi %8, %9 : vector<8x128xi1>
    %23 = arith.andi %22, %11 : vector<8x128xi1>
    %24 = arith.andi %5, %9 : vector<8x128xi1>
    %25 = arith.andi %24, %11 : vector<8x128xi1>
    %26 = arith.andi %5, %9 : vector<8x128xi1>
    %27 = arith.andi %26, %10 : vector<8x128xi1>
    %28 = arith.mulf %0, %0 : vector<8x128xf32>
    %29 = arith.mulf %1, %1 : vector<8x128xf32>
    %30 = arith.addf %28, %29 : vector<8x128xf32>
    %cst_7 = arith.constant 0.00999999977 : f32
    %31 = vector.broadcast %cst_7 : f32 to vector<8x128xf32>
    %32 = arith.cmpf ole, %30, %31 : vector<8x128xf32>
    %cst_8 = arith.constant 2.500000e-03 : f32
    %33 = vector.broadcast %cst_8 : f32 to vector<8x128xf32>
    %34 = arith.cmpf olt, %30, %33 : vector<8x128xf32>
    %cst_9 = arith.constant 2.500000e-03 : f32
    %35 = vector.broadcast %cst_9 : f32 to vector<8x128xf32>
    %36 = arith.cmpf oge, %30, %35 : vector<8x128xf32>
    %37 = arith.andi %36, %32 : vector<8x128xi1>
    %cst_10 = arith.constant 0.000000e+00 : f32
    %38 = vector.broadcast %cst_10 : f32 to vector<8x16xf32>
    %c0_11 = arith.constant 0 : index
    %c0_12 = arith.constant 0 : index
    %39 = vector.load %arg7[%c0_11, %c0_12] : memref<8x16xf32, #tpu.memory_space<vmem>>, vector<8x16xf32>
    tpu.vector_store %arg7[%c0_11, %c0_12], %38 {strides = array<i32>} : memref<8x16xf32, #tpu.memory_space<vmem>>, vector<8x16xf32>,
    %40 = arith.andi %13, %34 : vector<8x128xi1>
    %cst_13 = arith.constant 1.000000e+00 : f32
    %cst_14 = arith.constant 0.000000e+00 : f32
    %41 = vector.broadcast %cst_13 : f32 to vector<8x128xf32>
    %42 = vector.broadcast %cst_14 : f32 to vector<8x128xf32>
    %43 = arith.select %40, %41, %42 : vector<8x128xi1>, vector<8x128xf32>
    %cst_15 = arith.constant dense<0.000000e+00> : vector<8xf32>
    %44 = vector.multi_reduction <add>, %43, %cst_15 [1] : vector<8x128xf32> to vector<8xf32>
    %45 = vector.shape_cast %44 : vector<8xf32> to vector<8x1xf32>
    %cst_16 = arith.constant 1.000000e+00 : f32
    %46 = vector.broadcast %cst_16 : f32 to vector<8x1xf32>
    %47 = arith.maximumf %45, %46 : vector<8x1xf32>
    %48 = tpu.reciprocal %47 : vector<8x1xf32> -> vector<8x1xf32>
    %c0_17 = arith.constant 0 : index
    %c0_18 = arith.constant 0 : index
    %49 = vector.load %arg3[%c0_17, %c0_18] : memref<8x128xf32, #tpu.memory_space<vmem>>, vector<8x128xf32>
    %cst_19 = arith.constant 0.000000e+00 : f32
    %50 = vector.broadcast %cst_19 : f32 to vector<8x128xf32>
    %51 = arith.select %40, %49, %50 : vector<8x128xi1>, vector<8x128xf32>
    %cst_20 = arith.constant dense<0.000000e+00> : vector<8xf32>
    %52 = vector.multi_reduction <add>, %51, %cst_20 [1] : vector<8x128xf32> to vector<8xf32>
    %53 = vector.shape_cast %52 : vector<8xf32> to vector<8x1xf32>
    %54 = arith.mulf %53, %48 : vector<8x1xf32>
    %c0_21 = arith.constant 0 : index
    %c0_22 = arith.constant 0 : index
    %55 = vector.load %arg7[%c0_21, %c0_22] : memref<8x16xf32, #tpu.memory_space<vmem>>, vector<8x1xf32>
    tpu.vector_store %arg7[%c0_21, %c0_22], %54 {strides = array<i32>} : memref<8x16xf32, #tpu.memory_space<vmem>>, vector<8x1xf32>,
    %56 = arith.andi %13, %37 : vector<8x128xi1>
    %cst_23 = arith.constant 1.000000e+00 : f32
    %cst_24 = arith.constant 0.000000e+00 : f32
    %57 = vector.broadcast %cst_23 : f32 to vector<8x128xf32>
    %58 = vector.broadcast %cst_24 : f32 to vector<8x128xf32>
    %59 = arith.select %56, %57, %58 : vector<8x128xi1>, vector<8x128xf32>
    %cst_25 = arith.constant dense<0.000000e+00> : vector<8xf32>
    %60 = vector.multi_reduction <add>, %59, %cst_25 [1] : vector<8x128xf32> to vector<8xf32>
    %61 = vector.shape_cast %60 : vector<8xf32> to vector<8x1xf32>
    %cst_26 = arith.constant 1.000000e+00 : f32
    %62 = vector.broadcast %cst_26 : f32 to vector<8x1xf32>
    %63 = arith.maximumf %61, %62 : vector<8x1xf32>
    %64 = tpu.reciprocal %63 : vector<8x1xf32> -> vector<8x1xf32>
    %c0_27 = arith.constant 0 : index
    %c0_28 = arith.constant 0 : index
    %65 = vector.load %arg3[%c0_27, %c0_28] : memref<8x128xf32, #tpu.memory_space<vmem>>, vector<8x128xf32>
    %cst_29 = arith.constant 0.000000e+00 : f32
    %66 = vector.broadcast %cst_29 : f32 to vector<8x128xf32>
    %67 = arith.select %56, %65, %66 : vector<8x128xi1>, vector<8x128xf32>
    %cst_30 = arith.constant dense<0.000000e+00> : vector<8xf32>
    %68 = vector.multi_reduction <add>, %67, %cst_30 [1] : vector<8x128xf32> to vector<8xf32>
    %69 = vector.shape_cast %68 : vector<8xf32> to vector<8x1xf32>
    %70 = arith.mulf %69, %64 : vector<8x1xf32>
    %c0_31 = arith.constant 0 : index
    %c1 = arith.constant 1 : index
    %71 = vector.load %arg7[%c0_31, %c1] : memref<8x16xf32, #tpu.memory_space<vmem>>, vector<8x1xf32>
    tpu.vector_store %arg7[%c0_31, %c1], %70 {strides = array<i32>} : memref<8x16xf32, #tpu.memory_space<vmem>>, vector<8x1xf32>,
    %72 = arith.andi %15, %34 : vector<8x128xi1>
    %cst_32 = arith.constant 1.000000e+00 : f32
    %cst_33 = arith.constant 0.000000e+00 : f32
    %73 = vector.broadcast %cst_32 : f32 to vector<8x128xf32>
    %74 = vector.broadcast %cst_33 : f32 to vector<8x128xf32>
    %75 = arith.select %72, %73, %74 : vector<8x128xi1>, vector<8x128xf32>
    %cst_34 = arith.constant dense<0.000000e+00> : vector<8xf32>
    %76 = vector.multi_reduction <add>, %75, %cst_34 [1] : vector<8x128xf32> to vector<8xf32>
    %77 = vector.shape_cast %76 : vector<8xf32> to vector<8x1xf32>
    %cst_35 = arith.constant 1.000000e+00 : f32
    %78 = vector.broadcast %cst_35 : f32 to vector<8x1xf32>
    %79 = arith.maximumf %77, %78 : vector<8x1xf32>
    %80 = tpu.reciprocal %79 : vector<8x1xf32> -> vector<8x1xf32>
    %c0_36 = arith.constant 0 : index
    %c0_37 = arith.constant 0 : index
    %81 = vector.load %arg3[%c0_36, %c0_37] : memref<8x128xf32, #tpu.memory_space<vmem>>, vector<8x128xf32>
    %cst_38 = arith.constant 0.000000e+00 : f32
    %82 = vector.broadcast %cst_38 : f32 to vector<8x128xf32>
    %83 = arith.select %72, %81, %82 : vector<8x128xi1>, vector<8x128xf32>
    %cst_39 = arith.constant dense<0.000000e+00> : vector<8xf32>
    %84 = vector.multi_reduction <add>, %83, %cst_39 [1] : vector<8x128xf32> to vector<8xf32>
    %85 = vector.shape_cast %84 : vector<8xf32> to vector<8x1xf32>
    %86 = arith.mulf %85, %80 : vector<8x1xf32>
    %c0_40 = arith.constant 0 : index
    %c2 = arith.constant 2 : index
    %87 = vector.load %arg7[%c0_40, %c2] : memref<8x16xf32, #tpu.memory_space<vmem>>, vector<8x1xf32>
    tpu.vector_store %arg7[%c0_40, %c2], %86 {strides = array<i32>} : memref<8x16xf32, #tpu.memory_space<vmem>>, vector<8x1xf32>,
    %88 = arith.andi %15, %37 : vector<8x128xi1>
    %cst_41 = arith.constant 1.000000e+00 : f32
    %cst_42 = arith.constant 0.000000e+00 : f32
    %89 = vector.broadcast %cst_41 : f32 to vector<8x128xf32>
    %90 = vector.broadcast %cst_42 : f32 to vector<8x128xf32>
    %91 = arith.select %88, %89, %90 : vector<8x128xi1>, vector<8x128xf32>
    %cst_43 = arith.constant dense<0.000000e+00> : vector<8xf32>
    %92 = vector.multi_reduction <add>, %91, %cst_43 [1] : vector<8x128xf32> to vector<8xf32>
    %93 = vector.shape_cast %92 : vector<8xf32> to vector<8x1xf32>
    %cst_44 = arith.constant 1.000000e+00 : f32
    %94 = vector.broadcast %cst_44 : f32 to vector<8x1xf32>
    %95 = arith.maximumf %93, %94 : vector<8x1xf32>
    %96 = tpu.reciprocal %95 : vector<8x1xf32> -> vector<8x1xf32>
    %c0_45 = arith.constant 0 : index
    %c0_46 = arith.constant 0 : index
    %97 = vector.load %arg3[%c0_45, %c0_46] : memref<8x128xf32, #tpu.memory_space<vmem>>, vector<8x128xf32>
    %cst_47 = arith.constant 0.000000e+00 : f32
    %98 = vector.broadcast %cst_47 : f32 to vector<8x128xf32>
    %99 = arith.select %88, %97, %98 : vector<8x128xi1>, vector<8x128xf32>
    %cst_48 = arith.constant dense<0.000000e+00> : vector<8xf32>
    %100 = vector.multi_reduction <add>, %99, %cst_48 [1] : vector<8x128xf32> to vector<8xf32>
    %101 = vector.shape_cast %100 : vector<8xf32> to vector<8x1xf32>
    %102 = arith.mulf %101, %96 : vector<8x1xf32>
    %c0_49 = arith.constant 0 : index
    %c3 = arith.constant 3 : index
    %103 = vector.load %arg7[%c0_49, %c3] : memref<8x16xf32, #tpu.memory_space<vmem>>, vector<8x1xf32>
    tpu.vector_store %arg7[%c0_49, %c3], %102 {strides = array<i32>} : memref<8x16xf32, #tpu.memory_space<vmem>>, vector<8x1xf32>,
    %104 = arith.andi %17, %34 : vector<8x128xi1>
    %cst_50 = arith.constant 1.000000e+00 : f32
    %cst_51 = arith.constant 0.000000e+00 : f32
    %105 = vector.broadcast %cst_50 : f32 to vector<8x128xf32>
    %106 = vector.broadcast %cst_51 : f32 to vector<8x128xf32>
    %107 = arith.select %104, %105, %106 : vector<8x128xi1>, vector<8x128xf32>
    %cst_52 = arith.constant dense<0.000000e+00> : vector<8xf32>
    %108 = vector.multi_reduction <add>, %107, %cst_52 [1] : vector<8x128xf32> to vector<8xf32>
    %109 = vector.shape_cast %108 : vector<8xf32> to vector<8x1xf32>
    %cst_53 = arith.constant 1.000000e+00 : f32
    %110 = vector.broadcast %cst_53 : f32 to vector<8x1xf32>
    %111 = arith.maximumf %109, %110 : vector<8x1xf32>
    %112 = tpu.reciprocal %111 : vector<8x1xf32> -> vector<8x1xf32>
    %c0_54 = arith.constant 0 : index
    %c0_55 = arith.constant 0 : index
    %113 = vector.load %arg3[%c0_54, %c0_55] : memref<8x128xf32, #tpu.memory_space<vmem>>, vector<8x128xf32>
    %cst_56 = arith.constant 0.000000e+00 : f32
    %114 = vector.broadcast %cst_56 : f32 to vector<8x128xf32>
    %115 = arith.select %104, %113, %114 : vector<8x128xi1>, vector<8x128xf32>
    %cst_57 = arith.constant dense<0.000000e+00> : vector<8xf32>
    %116 = vector.multi_reduction <add>, %115, %cst_57 [1] : vector<8x128xf32> to vector<8xf32>
    %117 = vector.shape_cast %116 : vector<8xf32> to vector<8x1xf32>
    %118 = arith.mulf %117, %112 : vector<8x1xf32>
    %c0_58 = arith.constant 0 : index
    %c4 = arith.constant 4 : index
    %119 = vector.load %arg7[%c0_58, %c4] : memref<8x16xf32, #tpu.memory_space<vmem>>, vector<8x1xf32>
    tpu.vector_store %arg7[%c0_58, %c4], %118 {strides = array<i32>} : memref<8x16xf32, #tpu.memory_space<vmem>>, vector<8x1xf32>,
    %120 = arith.andi %17, %37 : vector<8x128xi1>
    %cst_59 = arith.constant 1.000000e+00 : f32
    %cst_60 = arith.constant 0.000000e+00 : f32
    %121 = vector.broadcast %cst_59 : f32 to vector<8x128xf32>
    %122 = vector.broadcast %cst_60 : f32 to vector<8x128xf32>
    %123 = arith.select %120, %121, %122 : vector<8x128xi1>, vector<8x128xf32>
    %cst_61 = arith.constant dense<0.000000e+00> : vector<8xf32>
    %124 = vector.multi_reduction <add>, %123, %cst_61 [1] : vector<8x128xf32> to vector<8xf32>
    %125 = vector.shape_cast %124 : vector<8xf32> to vector<8x1xf32>
    %cst_62 = arith.constant 1.000000e+00 : f32
    %126 = vector.broadcast %cst_62 : f32 to vector<8x1xf32>
    %127 = arith.maximumf %125, %126 : vector<8x1xf32>
    %128 = tpu.reciprocal %127 : vector<8x1xf32> -> vector<8x1xf32>
    %c0_63 = arith.constant 0 : index
    %c0_64 = arith.constant 0 : index
    %129 = vector.load %arg3[%c0_63, %c0_64] : memref<8x128xf32, #tpu.memory_space<vmem>>, vector<8x128xf32>
    %cst_65 = arith.constant 0.000000e+00 : f32
    %130 = vector.broadcast %cst_65 : f32 to vector<8x128xf32>
    %131 = arith.select %120, %129, %130 : vector<8x128xi1>, vector<8x128xf32>
    %cst_66 = arith.constant dense<0.000000e+00> : vector<8xf32>
    %132 = vector.multi_reduction <add>, %131, %cst_66 [1] : vector<8x128xf32> to vector<8xf32>
    %133 = vector.shape_cast %132 : vector<8xf32> to vector<8x1xf32>
    %134 = arith.mulf %133, %128 : vector<8x1xf32>
    %c0_67 = arith.constant 0 : index
    %c5 = arith.constant 5 : index
    %135 = vector.load %arg7[%c0_67, %c5] : memref<8x16xf32, #tpu.memory_space<vmem>>, vector<8x1xf32>
    tpu.vector_store %arg7[%c0_67, %c5], %134 {strides = array<i32>} : memref<8x16xf32, #tpu.memory_space<vmem>>, vector<8x1xf32>,
    %136 = arith.andi %19, %34 : vector<8x128xi1>
    %cst_68 = arith.constant 1.000000e+00 : f32
    %cst_69 = arith.constant 0.000000e+00 : f32
    %137 = vector.broadcast %cst_68 : f32 to vector<8x128xf32>
    %138 = vector.broadcast %cst_69 : f32 to vector<8x128xf32>
    %139 = arith.select %136, %137, %138 : vector<8x128xi1>, vector<8x128xf32>
    %cst_70 = arith.constant dense<0.000000e+00> : vector<8xf32>
    %140 = vector.multi_reduction <add>, %139, %cst_70 [1] : vector<8x128xf32> to vector<8xf32>
    %141 = vector.shape_cast %140 : vector<8xf32> to vector<8x1xf32>
    %cst_71 = arith.constant 1.000000e+00 : f32
    %142 = vector.broadcast %cst_71 : f32 to vector<8x1xf32>
    %143 = arith.maximumf %141, %142 : vector<8x1xf32>
    %144 = tpu.reciprocal %143 : vector<8x1xf32> -> vector<8x1xf32>
    %c0_72 = arith.constant 0 : index
    %c0_73 = arith.constant 0 : index
    %145 = vector.load %arg3[%c0_72, %c0_73] : memref<8x128xf32, #tpu.memory_space<vmem>>, vector<8x128xf32>
    %cst_74 = arith.constant 0.000000e+00 : f32
    %146 = vector.broadcast %cst_74 : f32 to vector<8x128xf32>
    %147 = arith.select %136, %145, %146 : vector<8x128xi1>, vector<8x128xf32>
    %cst_75 = arith.constant dense<0.000000e+00> : vector<8xf32>
    %148 = vector.multi_reduction <add>, %147, %cst_75 [1] : vector<8x128xf32> to vector<8xf32>
    %149 = vector.shape_cast %148 : vector<8xf32> to vector<8x1xf32>
    %150 = arith.mulf %149, %144 : vector<8x1xf32>
    %c0_76 = arith.constant 0 : index
    %c6 = arith.constant 6 : index
    %151 = vector.load %arg7[%c0_76, %c6] : memref<8x16xf32, #tpu.memory_space<vmem>>, vector<8x1xf32>
    tpu.vector_store %arg7[%c0_76, %c6], %150 {strides = array<i32>} : memref<8x16xf32, #tpu.memory_space<vmem>>, vector<8x1xf32>,
    %152 = arith.andi %19, %37 : vector<8x128xi1>
    %cst_77 = arith.constant 1.000000e+00 : f32
    %cst_78 = arith.constant 0.000000e+00 : f32
    %153 = vector.broadcast %cst_77 : f32 to vector<8x128xf32>
    %154 = vector.broadcast %cst_78 : f32 to vector<8x128xf32>
    %155 = arith.select %152, %153, %154 : vector<8x128xi1>, vector<8x128xf32>
    %cst_79 = arith.constant dense<0.000000e+00> : vector<8xf32>
    %156 = vector.multi_reduction <add>, %155, %cst_79 [1] : vector<8x128xf32> to vector<8xf32>
    %157 = vector.shape_cast %156 : vector<8xf32> to vector<8x1xf32>
    %cst_80 = arith.constant 1.000000e+00 : f32
    %158 = vector.broadcast %cst_80 : f32 to vector<8x1xf32>
    %159 = arith.maximumf %157, %158 : vector<8x1xf32>
    %160 = tpu.reciprocal %159 : vector<8x1xf32> -> vector<8x1xf32>
    %c0_81 = arith.constant 0 : index
    %c0_82 = arith.constant 0 : index
    %161 = vector.load %arg3[%c0_81, %c0_82] : memref<8x128xf32, #tpu.memory_space<vmem>>, vector<8x128xf32>
    %cst_83 = arith.constant 0.000000e+00 : f32
    %162 = vector.broadcast %cst_83 : f32 to vector<8x128xf32>
    %163 = arith.select %152, %161, %162 : vector<8x128xi1>, vector<8x128xf32>
    %cst_84 = arith.constant dense<0.000000e+00> : vector<8xf32>
    %164 = vector.multi_reduction <add>, %163, %cst_84 [1] : vector<8x128xf32> to vector<8xf32>
    %165 = vector.shape_cast %164 : vector<8xf32> to vector<8x1xf32>
    %166 = arith.mulf %165, %160 : vector<8x1xf32>
    %c0_85 = arith.constant 0 : index
    %c7 = arith.constant 7 : index
    %167 = vector.load %arg7[%c0_85, %c7] : memref<8x16xf32, #tpu.memory_space<vmem>>, vector<8x1xf32>
    tpu.vector_store %arg7[%c0_85, %c7], %166 {strides = array<i32>} : memref<8x16xf32, #tpu.memory_space<vmem>>, vector<8x1xf32>,
    %168 = arith.andi %21, %34 : vector<8x128xi1>
    %cst_86 = arith.constant 1.000000e+00 : f32
    %cst_87 = arith.constant 0.000000e+00 : f32
    %169 = vector.broadcast %cst_86 : f32 to vector<8x128xf32>
    %170 = vector.broadcast %cst_87 : f32 to vector<8x128xf32>
    %171 = arith.select %168, %169, %170 : vector<8x128xi1>, vector<8x128xf32>
    %cst_88 = arith.constant dense<0.000000e+00> : vector<8xf32>
    %172 = vector.multi_reduction <add>, %171, %cst_88 [1] : vector<8x128xf32> to vector<8xf32>
    %173 = vector.shape_cast %172 : vector<8xf32> to vector<8x1xf32>
    %cst_89 = arith.constant 1.000000e+00 : f32
    %174 = vector.broadcast %cst_89 : f32 to vector<8x1xf32>
    %175 = arith.maximumf %173, %174 : vector<8x1xf32>
    %176 = tpu.reciprocal %175 : vector<8x1xf32> -> vector<8x1xf32>
    %c0_90 = arith.constant 0 : index
    %c0_91 = arith.constant 0 : index
    %177 = vector.load %arg3[%c0_90, %c0_91] : memref<8x128xf32, #tpu.memory_space<vmem>>, vector<8x128xf32>
    %cst_92 = arith.constant 0.000000e+00 : f32
    %178 = vector.broadcast %cst_92 : f32 to vector<8x128xf32>
    %179 = arith.select %168, %177, %178 : vector<8x128xi1>, vector<8x128xf32>
    %cst_93 = arith.constant dense<0.000000e+00> : vector<8xf32>
    %180 = vector.multi_reduction <add>, %179, %cst_93 [1] : vector<8x128xf32> to vector<8xf32>
    %181 = vector.shape_cast %180 : vector<8xf32> to vector<8x1xf32>
    %182 = arith.mulf %181, %176 : vector<8x1xf32>
    %c0_94 = arith.constant 0 : index
    %c8 = arith.constant 8 : index
    %183 = vector.load %arg7[%c0_94, %c8] : memref<8x16xf32, #tpu.memory_space<vmem>>, vector<8x1xf32>
    tpu.vector_store %arg7[%c0_94, %c8], %182 {strides = array<i32>} : memref<8x16xf32, #tpu.memory_space<vmem>>, vector<8x1xf32>,
    %184 = arith.andi %21, %37 : vector<8x128xi1>
    %cst_95 = arith.constant 1.000000e+00 : f32
    %cst_96 = arith.constant 0.000000e+00 : f32
    %185 = vector.broadcast %cst_95 : f32 to vector<8x128xf32>
    %186 = vector.broadcast %cst_96 : f32 to vector<8x128xf32>
    %187 = arith.select %184, %185, %186 : vector<8x128xi1>, vector<8x128xf32>
    %cst_97 = arith.constant dense<0.000000e+00> : vector<8xf32>
    %188 = vector.multi_reduction <add>, %187, %cst_97 [1] : vector<8x128xf32> to vector<8xf32>
    %189 = vector.shape_cast %188 : vector<8xf32> to vector<8x1xf32>
    %cst_98 = arith.constant 1.000000e+00 : f32
    %190 = vector.broadcast %cst_98 : f32 to vector<8x1xf32>
    %191 = arith.maximumf %189, %190 : vector<8x1xf32>
    %192 = tpu.reciprocal %191 : vector<8x1xf32> -> vector<8x1xf32>
    %c0_99 = arith.constant 0 : index
    %c0_100 = arith.constant 0 : index
    %193 = vector.load %arg3[%c0_99, %c0_100] : memref<8x128xf32, #tpu.memory_space<vmem>>, vector<8x128xf32>
    %cst_101 = arith.constant 0.000000e+00 : f32
    %194 = vector.broadcast %cst_101 : f32 to vector<8x128xf32>
    %195 = arith.select %184, %193, %194 : vector<8x128xi1>, vector<8x128xf32>
    %cst_102 = arith.constant dense<0.000000e+00> : vector<8xf32>
    %196 = vector.multi_reduction <add>, %195, %cst_102 [1] : vector<8x128xf32> to vector<8xf32>
    %197 = vector.shape_cast %196 : vector<8xf32> to vector<8x1xf32>
    %198 = arith.mulf %197, %192 : vector<8x1xf32>
    %c0_103 = arith.constant 0 : index
    %c9 = arith.constant 9 : index
    %199 = vector.load %arg7[%c0_103, %c9] : memref<8x16xf32, #tpu.memory_space<vmem>>, vector<8x1xf32>
    tpu.vector_store %arg7[%c0_103, %c9], %198 {strides = array<i32>} : memref<8x16xf32, #tpu.memory_space<vmem>>, vector<8x1xf32>,
    %200 = arith.andi %23, %34 : vector<8x128xi1>
    %cst_104 = arith.constant 1.000000e+00 : f32
    %cst_105 = arith.constant 0.000000e+00 : f32
    %201 = vector.broadcast %cst_104 : f32 to vector<8x128xf32>
    %202 = vector.broadcast %cst_105 : f32 to vector<8x128xf32>
    %203 = arith.select %200, %201, %202 : vector<8x128xi1>, vector<8x128xf32>
    %cst_106 = arith.constant dense<0.000000e+00> : vector<8xf32>
    %204 = vector.multi_reduction <add>, %203, %cst_106 [1] : vector<8x128xf32> to vector<8xf32>
    %205 = vector.shape_cast %204 : vector<8xf32> to vector<8x1xf32>
    %cst_107 = arith.constant 1.000000e+00 : f32
    %206 = vector.broadcast %cst_107 : f32 to vector<8x1xf32>
    %207 = arith.maximumf %205, %206 : vector<8x1xf32>
    %208 = tpu.reciprocal %207 : vector<8x1xf32> -> vector<8x1xf32>
    %c0_108 = arith.constant 0 : index
    %c0_109 = arith.constant 0 : index
    %209 = vector.load %arg3[%c0_108, %c0_109] : memref<8x128xf32, #tpu.memory_space<vmem>>, vector<8x128xf32>
    %cst_110 = arith.constant 0.000000e+00 : f32
    %210 = vector.broadcast %cst_110 : f32 to vector<8x128xf32>
    %211 = arith.select %200, %209, %210 : vector<8x128xi1>, vector<8x128xf32>
    %cst_111 = arith.constant dense<0.000000e+00> : vector<8xf32>
    %212 = vector.multi_reduction <add>, %211, %cst_111 [1] : vector<8x128xf32> to vector<8xf32>
    %213 = vector.shape_cast %212 : vector<8xf32> to vector<8x1xf32>
    %214 = arith.mulf %213, %208 : vector<8x1xf32>
    %c0_112 = arith.constant 0 : index
    %c10 = arith.constant 10 : index
    %215 = vector.load %arg7[%c0_112, %c10] : memref<8x16xf32, #tpu.memory_space<vmem>>, vector<8x1xf32>
    tpu.vector_store %arg7[%c0_112, %c10], %214 {strides = array<i32>} : memref<8x16xf32, #tpu.memory_space<vmem>>, vector<8x1xf32>,
    %216 = arith.andi %23, %37 : vector<8x128xi1>
    %cst_113 = arith.constant 1.000000e+00 : f32
    %cst_114 = arith.constant 0.000000e+00 : f32
    %217 = vector.broadcast %cst_113 : f32 to vector<8x128xf32>
    %218 = vector.broadcast %cst_114 : f32 to vector<8x128xf32>
    %219 = arith.select %216, %217, %218 : vector<8x128xi1>, vector<8x128xf32>
    %cst_115 = arith.constant dense<0.000000e+00> : vector<8xf32>
    %220 = vector.multi_reduction <add>, %219, %cst_115 [1] : vector<8x128xf32> to vector<8xf32>
    %221 = vector.shape_cast %220 : vector<8xf32> to vector<8x1xf32>
    %cst_116 = arith.constant 1.000000e+00 : f32
    %222 = vector.broadcast %cst_116 : f32 to vector<8x1xf32>
    %223 = arith.maximumf %221, %222 : vector<8x1xf32>
    %224 = tpu.reciprocal %223 : vector<8x1xf32> -> vector<8x1xf32>
    %c0_117 = arith.constant 0 : index
    %c0_118 = arith.constant 0 : index
    %225 = vector.load %arg3[%c0_117, %c0_118] : memref<8x128xf32, #tpu.memory_space<vmem>>, vector<8x128xf32>
    %cst_119 = arith.constant 0.000000e+00 : f32
    %226 = vector.broadcast %cst_119 : f32 to vector<8x128xf32>
    %227 = arith.select %216, %225, %226 : vector<8x128xi1>, vector<8x128xf32>
    %cst_120 = arith.constant dense<0.000000e+00> : vector<8xf32>
    %228 = vector.multi_reduction <add>, %227, %cst_120 [1] : vector<8x128xf32> to vector<8xf32>
    %229 = vector.shape_cast %228 : vector<8xf32> to vector<8x1xf32>
    %230 = arith.mulf %229, %224 : vector<8x1xf32>
    %c0_121 = arith.constant 0 : index
    %c11 = arith.constant 11 : index
    %231 = vector.load %arg7[%c0_121, %c11] : memref<8x16xf32, #tpu.memory_space<vmem>>, vector<8x1xf32>
    tpu.vector_store %arg7[%c0_121, %c11], %230 {strides = array<i32>} : memref<8x16xf32, #tpu.memory_space<vmem>>, vector<8x1xf32>,
    %232 = arith.andi %25, %34 : vector<8x128xi1>
    %cst_122 = arith.constant 1.000000e+00 : f32
    %cst_123 = arith.constant 0.000000e+00 : f32
    %233 = vector.broadcast %cst_122 : f32 to vector<8x128xf32>
    %234 = vector.broadcast %cst_123 : f32 to vector<8x128xf32>
    %235 = arith.select %232, %233, %234 : vector<8x128xi1>, vector<8x128xf32>
    %cst_124 = arith.constant dense<0.000000e+00> : vector<8xf32>
    %236 = vector.multi_reduction <add>, %235, %cst_124 [1] : vector<8x128xf32> to vector<8xf32>
    %237 = vector.shape_cast %236 : vector<8xf32> to vector<8x1xf32>
    %cst_125 = arith.constant 1.000000e+00 : f32
    %238 = vector.broadcast %cst_125 : f32 to vector<8x1xf32>
    %239 = arith.maximumf %237, %238 : vector<8x1xf32>
    %240 = tpu.reciprocal %239 : vector<8x1xf32> -> vector<8x1xf32>
    %c0_126 = arith.constant 0 : index
    %c0_127 = arith.constant 0 : index
    %241 = vector.load %arg3[%c0_126, %c0_127] : memref<8x128xf32, #tpu.memory_space<vmem>>, vector<8x128xf32>
    %cst_128 = arith.constant 0.000000e+00 : f32
    %242 = vector.broadcast %cst_128 : f32 to vector<8x128xf32>
    %243 = arith.select %232, %241, %242 : vector<8x128xi1>, vector<8x128xf32>
    %cst_129 = arith.constant dense<0.000000e+00> : vector<8xf32>
    %244 = vector.multi_reduction <add>, %243, %cst_129 [1] : vector<8x128xf32> to vector<8xf32>
    %245 = vector.shape_cast %244 : vector<8xf32> to vector<8x1xf32>
    %246 = arith.mulf %245, %240 : vector<8x1xf32>
    %c0_130 = arith.constant 0 : index
    %c12 = arith.constant 12 : index
    %247 = vector.load %arg7[%c0_130, %c12] : memref<8x16xf32, #tpu.memory_space<vmem>>, vector<8x1xf32>
    tpu.vector_store %arg7[%c0_130, %c12], %246 {strides = array<i32>} : memref<8x16xf32, #tpu.memory_space<vmem>>, vector<8x1xf32>,
    %248 = arith.andi %25, %37 : vector<8x128xi1>
    %cst_131 = arith.constant 1.000000e+00 : f32
    %cst_132 = arith.constant 0.000000e+00 : f32
    %249 = vector.broadcast %cst_131 : f32 to vector<8x128xf32>
    %250 = vector.broadcast %cst_132 : f32 to vector<8x128xf32>
    %251 = arith.select %248, %249, %250 : vector<8x128xi1>, vector<8x128xf32>
    %cst_133 = arith.constant dense<0.000000e+00> : vector<8xf32>
    %252 = vector.multi_reduction <add>, %251, %cst_133 [1] : vector<8x128xf32> to vector<8xf32>
    %253 = vector.shape_cast %252 : vector<8xf32> to vector<8x1xf32>
    %cst_134 = arith.constant 1.000000e+00 : f32
    %254 = vector.broadcast %cst_134 : f32 to vector<8x1xf32>
    %255 = arith.maximumf %253, %254 : vector<8x1xf32>
    %256 = tpu.reciprocal %255 : vector<8x1xf32> -> vector<8x1xf32>
    %c0_135 = arith.constant 0 : index
    %c0_136 = arith.constant 0 : index
    %257 = vector.load %arg3[%c0_135, %c0_136] : memref<8x128xf32, #tpu.memory_space<vmem>>, vector<8x128xf32>
    %cst_137 = arith.constant 0.000000e+00 : f32
    %258 = vector.broadcast %cst_137 : f32 to vector<8x128xf32>
    %259 = arith.select %248, %257, %258 : vector<8x128xi1>, vector<8x128xf32>
    %cst_138 = arith.constant dense<0.000000e+00> : vector<8xf32>
    %260 = vector.multi_reduction <add>, %259, %cst_138 [1] : vector<8x128xf32> to vector<8xf32>
    %261 = vector.shape_cast %260 : vector<8xf32> to vector<8x1xf32>
    %262 = arith.mulf %261, %256 : vector<8x1xf32>
    %c0_139 = arith.constant 0 : index
    %c13 = arith.constant 13 : index
    %263 = vector.load %arg7[%c0_139, %c13] : memref<8x16xf32, #tpu.memory_space<vmem>>, vector<8x1xf32>
    tpu.vector_store %arg7[%c0_139, %c13], %262 {strides = array<i32>} : memref<8x16xf32, #tpu.memory_space<vmem>>, vector<8x1xf32>,
    %264 = arith.andi %27, %34 : vector<8x128xi1>
    %cst_140 = arith.constant 1.000000e+00 : f32
    %cst_141 = arith.constant 0.000000e+00 : f32
    %265 = vector.broadcast %cst_140 : f32 to vector<8x128xf32>
    %266 = vector.broadcast %cst_141 : f32 to vector<8x128xf32>
    %267 = arith.select %264, %265, %266 : vector<8x128xi1>, vector<8x128xf32>
    %cst_142 = arith.constant dense<0.000000e+00> : vector<8xf32>
    %268 = vector.multi_reduction <add>, %267, %cst_142 [1] : vector<8x128xf32> to vector<8xf32>
    %269 = vector.shape_cast %268 : vector<8xf32> to vector<8x1xf32>
    %cst_143 = arith.constant 1.000000e+00 : f32
    %270 = vector.broadcast %cst_143 : f32 to vector<8x1xf32>
    %271 = arith.maximumf %269, %270 : vector<8x1xf32>
    %272 = tpu.reciprocal %271 : vector<8x1xf32> -> vector<8x1xf32>
    %c0_144 = arith.constant 0 : index
    %c0_145 = arith.constant 0 : index
    %273 = vector.load %arg3[%c0_144, %c0_145] : memref<8x128xf32, #tpu.memory_space<vmem>>, vector<8x128xf32>
    %cst_146 = arith.constant 0.000000e+00 : f32
    %274 = vector.broadcast %cst_146 : f32 to vector<8x128xf32>
    %275 = arith.select %264, %273, %274 : vector<8x128xi1>, vector<8x128xf32>
    %cst_147 = arith.constant dense<0.000000e+00> : vector<8xf32>
    %276 = vector.multi_reduction <add>, %275, %cst_147 [1] : vector<8x128xf32> to vector<8xf32>
    %277 = vector.shape_cast %276 : vector<8xf32> to vector<8x1xf32>
    %278 = arith.mulf %277, %272 : vector<8x1xf32>
    %c0_148 = arith.constant 0 : index
    %c14 = arith.constant 14 : index
    %279 = vector.load %arg7[%c0_148, %c14] : memref<8x16xf32, #tpu.memory_space<vmem>>, vector<8x1xf32>
    tpu.vector_store %arg7[%c0_148, %c14], %278 {strides = array<i32>} : memref<8x16xf32, #tpu.memory_space<vmem>>, vector<8x1xf32>,
    %280 = arith.andi %27, %37 : vector<8x128xi1>
    %cst_149 = arith.constant 1.000000e+00 : f32
    %cst_150 = arith.constant 0.000000e+00 : f32
    %281 = vector.broadcast %cst_149 : f32 to vector<8x128xf32>
    %282 = vector.broadcast %cst_150 : f32 to vector<8x128xf32>
    %283 = arith.select %280, %281, %282 : vector<8x128xi1>, vector<8x128xf32>
    %cst_151 = arith.constant dense<0.000000e+00> : vector<8xf32>
    %284 = vector.multi_reduction <add>, %283, %cst_151 [1] : vector<8x128xf32> to vector<8xf32>
    %285 = vector.shape_cast %284 : vector<8xf32> to vector<8x1xf32>
    %cst_152 = arith.constant 1.000000e+00 : f32
    %286 = vector.broadcast %cst_152 : f32 to vector<8x1xf32>
    %287 = arith.maximumf %285, %286 : vector<8x1xf32>
    %288 = tpu.reciprocal %287 : vector<8x1xf32> -> vector<8x1xf32>
    %c0_153 = arith.constant 0 : index
    %c0_154 = arith.constant 0 : index
    %289 = vector.load %arg3[%c0_153, %c0_154] : memref<8x128xf32, #tpu.memory_space<vmem>>, vector<8x128xf32>
    %cst_155 = arith.constant 0.000000e+00 : f32
    %290 = vector.broadcast %cst_155 : f32 to vector<8x128xf32>
    %291 = arith.select %280, %289, %290 : vector<8x128xi1>, vector<8x128xf32>
    %cst_156 = arith.constant dense<0.000000e+00> : vector<8xf32>
    %292 = vector.multi_reduction <add>, %291, %cst_156 [1] : vector<8x128xf32> to vector<8xf32>
    %293 = vector.shape_cast %292 : vector<8xf32> to vector<8x1xf32>
    %294 = arith.mulf %293, %288 : vector<8x1xf32>
    %c0_157 = arith.constant 0 : index
    %c15 = arith.constant 15 : index
    %295 = vector.load %arg7[%c0_157, %c15] : memref<8x16xf32, #tpu.memory_space<vmem>>, vector<8x1xf32>
    tpu.vector_store %arg7[%c0_157, %c15], %294 {strides = array<i32>} : memref<8x16xf32, #tpu.memory_space<vmem>>, vector<8x1xf32>,
    %c0_158 = arith.constant 0 : index
    %c0_159 = arith.constant 0 : index
    %296 = vector.load %arg7[%c0_158, %c0_159] : memref<8x16xf32, #tpu.memory_space<vmem>>, vector<8x16xf32>
    %c0_160 = arith.constant 0 : index
    %c0_161 = arith.constant 0 : index
    %297 = vector.load %arg4[%c0_160, %c0_161] : memref<16x128xf32, #tpu.memory_space<vmem>>, vector<16x128xf32>
    %cst_162 = arith.constant dense<0.000000e+00> : vector<8x128xf32>
    %298 = tpu.matmul %296, %297, %cst_162 {dimension_numbers = #tpu.dot_dimension_numbers<[1], [0], [0], [1], [0, 0, 1, 1], [], []>} : vector<8x16xf32>, vector<16x128xf32>, vector<8x128xf32> -> vector<8x128xf32>
    %c0_163 = arith.constant 0 : index
    %c0_164 = arith.constant 0 : index
    %299 = vector.load %arg5[%c0_163, %c0_164] : memref<1x128xf32, #tpu.memory_space<vmem>>, vector<1x128xf32>
    %300 = vector.broadcast %299 : vector<1x128xf32> to vector<8x128xf32>
    %301 = arith.addf %298, %300 : vector<8x128xf32>
    %c0_165 = arith.constant 0 : index
    %c0_166 = arith.constant 0 : index
    %302 = vector.load %arg6[%c0_165, %c0_166] : memref<8x128xf32, #tpu.memory_space<vmem>>, vector<8x128xf32>
    tpu.vector_store %arg6[%c0_165, %c0_166], %301 {strides = array<i32>} : memref<8x128xf32, #tpu.memory_space<vmem>>, vector<8x128xf32>,
    return
  }
  func.func @transform_0(%arg0: i32) -> (i32, i32) {
    %c0_i32 = arith.constant 0 : i32
    %c0_i32_0 = arith.constant 0 : i32
    return %arg0, %c0_i32 : i32, i32
  }
  func.func @transform_1(%arg0: i32) -> (i32, i32) {
    %c0_i32 = arith.constant 0 : i32
    %c0_i32_0 = arith.constant 0 : i32
    return %arg0, %c0_i32 : i32, i32
  }
  func.func @transform_2(%arg0: i32) -> (i32, i32) {
    %c0_i32 = arith.constant 0 : i32
    %c0_i32_0 = arith.constant 0 : i32
    return %arg0, %c0_i32 : i32, i32
  }
  func.func @transform_3(%arg0: i32) -> (i32, i32) {
    %c0_i32 = arith.constant 0 : i32
    %c0_i32_0 = arith.constant 0 : i32
    %c0_i32_1 = arith.constant 0 : i32
    return %c0_i32, %c0_i32_0 : i32, i32
  }
  func.func @transform_4(%arg0: i32) -> (i32, i32) {
    %c0_i32 = arith.constant 0 : i32
    %c0_i32_0 = arith.constant 0 : i32
    %c0_i32_1 = arith.constant 0 : i32
    return %c0_i32, %c0_i32_0 : i32, i32
  }
  func.func @transform_5(%arg0: i32) -> (i32, i32) {
    %c0_i32 = arith.constant 0 : i32
    %c0_i32_0 = arith.constant 0 : i32
    return %arg0, %c0_i32 : i32, i32
  }
}

</mosaic_0001>

<llo_original>
// kernel: tpu_custom_call.1
$region0: #{tpu_custom_call.1}
  #allocation0 [shape = 'u32[]', space=smem, size = 0x4, offset = 0x4, fixed_abs, tag = 'smem constant byte address 0x4 - core index']
  #allocation1 [shape = 'u32[72,128]{1,0:T(1,128)}', space=vmem, size = 0x9000, scoped, tag = 'internal scratch']
  #allocation2 [shape = 'f32[8,16]{1,0:T(8,128)}', space=vmem, size = 0x1000, scoped, tag = 'scratch operand']
  %s0 = inlined_call_operand.hbm [shape: f32[8,128], index: 0, kind: input, shape index: {}]
  %s1 = inlined_call_operand.hbm [shape: f32[8,128], index: 1, kind: input, shape index: {}]
  %s2 = inlined_call_operand.hbm [shape: f32[8,128], index: 2, kind: input, shape index: {}]
  %s3 = inlined_call_operand.hbm [shape: f32[16,128], index: 3, kind: input, shape index: {}]
  %s4 = inlined_call_operand.vmem [shape: f32[1,128], index: 4, kind: input, shape index: {}]
  %s5 = inlined_call_operand.hbm [shape: f32[8,128], index: 5, kind: output, shape index: {}]
  %s6 = sld [smem:[#allocation0]]
  $region46: #{tpu_custom_call.1} parent=0
    _
  %s8 = ssub.s32 1, %s6
  %s9 = scalar_select 0, %s8, %s6
  $region1: #{tpu_custom_call.1} parent=0
    #allocation3 [shape = 'u8[4096]{0}', space=vmem, size = 0x1000, scoped, tag = 'input window, operand 0, single buffered']
    #allocation4 [shape = 's32[1]{0}', space=sflag, size = 0x4, scoped, tag = 'scoped memory for tpu_custom_call.1']
    #allocation5 [shape = 's32[1]{0}', space=sflag, size = 0x4, scoped, tag = 'scoped memory for tpu_custom_call.1']
    #allocation6 [shape = 'u8[4096]{0}', space=vmem, size = 0x1000, scoped, tag = 'input window, operand 1, single buffered']
    #allocation7 [shape = 's32[1]{0}', space=sflag, size = 0x4, scoped, tag = 'scoped memory for tpu_custom_call.1']
    #allocation8 [shape = 'u8[4096]{0}', space=vmem, size = 0x1000, scoped, tag = 'input window, operand 2, single buffered']
    #allocation9 [shape = 'u8[8192]{0}', space=vmem, size = 0x2000, scoped, tag = 'input window, operand 3, single buffered']
    #allocation10 [shape = 's32[1]{0}', space=sflag, size = 0x4, scoped, tag = 'scoped memory for tpu_custom_call.1']
    #allocation11 [shape = 'u8[4096]{0}', space=vmem, size = 0x1000, scoped, tag = 'output window, operand 0, single buffered']
    %10 = vsyncpa [#allocation4], 0
    %11 = vsyncpa [#allocation7], 0
    %12 = vsyncpa [#allocation10], 0
    %13 = vsyncpa [#allocation5], 0
    // Predicated region
    $region2: #{tpu_custom_call.1} parent=1 // pred_check
      _
    $region3: #{tpu_custom_call.1} parent=1 // pred_check_branch
      %15 = sbr.rel (0) target = $region5
    $region4: #{tpu_custom_call.1} parent=1 // pred_region
      %17 = vsyncadd [#allocation4], 0
      %s19 = sshll.u32 %s0, 4
      %s20 = int_to_ptr.hbm [resolvable:$true] %s19
      %s21 = sshll.u32 [#allocation3], 4
      %s22 = int_to_ptr.vmem [resolvable:$true] %s21
      %24 = dma.hbm_to_vmem [thread:$0]  %s20, 128, %s22, [#allocation4]
    $region5: #{tpu_custom_call.1} parent=1 // pred_fallthru
      _
    // Predicated region
    $region6: #{tpu_custom_call.1} parent=1 // pred_check
      _
    $region7: #{tpu_custom_call.1} parent=1 // pred_check_branch
      %26 = sbr.rel (0) target = $region9
    $region8: #{tpu_custom_call.1} parent=1 // pred_region
      %28 = vsyncadd [#allocation7], 0
      %s30 = sshll.u32 %s1, 4
      %s31 = int_to_ptr.hbm [resolvable:$true] %s30
      %s32 = sshll.u32 [#allocation6], 4
      %s33 = int_to_ptr.vmem [resolvable:$true] %s32
      %35 = dma.hbm_to_vmem [thread:$0]  %s31, 128, %s33, [#allocation7]
    $region9: #{tpu_custom_call.1} parent=1 // pred_fallthru
      _
    // Predicated region
    $region10: #{tpu_custom_call.1} parent=1 // pred_check
      _
    $region11: #{tpu_custom_call.1} parent=1 // pred_check_branch
      %37 = sbr.rel (0) target = $region13
    $region12: #{tpu_custom_call.1} parent=1 // pred_region
      %39 = vsyncadd [#allocation7], 0
      %s41 = sshll.u32 %s2, 4
      %s42 = int_to_ptr.hbm [resolvable:$true] %s41
      %s43 = sshll.u32 [#allocation8], 4
      %s44 = int_to_ptr.vmem [resolvable:$true] %s43
      %46 = dma.hbm_to_vmem [thread:$0]  %s42, 128, %s44, [#allocation7]
    $region13: #{tpu_custom_call.1} parent=1 // pred_fallthru
      _
    // Predicated region
    $region14: #{tpu_custom_call.1} parent=1 // pred_check
      _
    $region15: #{tpu_custom_call.1} parent=1 // pred_check_branch
      %48 = sbr.rel (0) target = $region17
    $region16: #{tpu_custom_call.1} parent=1 // pred_region
      %50 = vsyncadd [#allocation10], 0
      %s51 = sshll.u32 %s3, 4
      %s52 = int_to_ptr.hbm [resolvable:$true] %s51
      %s53 = sshll.u32 [#allocation9], 4
      %s54 = int_to_ptr.vmem [resolvable:$true] %s53
      %59 = dma.hbm_to_vmem [thread:$0]  %s52, 256, %s54, [#allocation10], 128, 128, 8
    $region17: #{tpu_custom_call.1} parent=1 // pred_fallthru
      _
    // Predicated region
    $region18: #{tpu_custom_call.1} parent=1 // pred_check
      _
    $region19: #{tpu_custom_call.1} parent=1 // pred_check_branch
      %61 = sbr.rel (0) target = $region21
    $region20: #{tpu_custom_call.1} parent=1 // pred_region
      _
    $region21: #{tpu_custom_call.1} parent=1 // pred_fallthru
      _
    // Predicated region
    $region22: #{tpu_custom_call.1} parent=1 // pred_check
      _
    $region23: #{tpu_custom_call.1} parent=1 // pred_check_branch
      %63 = sbr.rel (0) target = $region25
    $region24: #{tpu_custom_call.1} parent=1 // pred_region
      %65 = dma.done [#allocation4], 128
    $region25: #{tpu_custom_call.1} parent=1 // pred_fallthru
      _
    // Predicated region
    $region26: #{tpu_custom_call.1} parent=1 // pred_check
      _
    $region27: #{tpu_custom_call.1} parent=1 // pred_check_branch
      %67 = sbr.rel (0) target = $region29
    $region28: #{tpu_custom_call.1} parent=1 // pred_region
      %69 = dma.done [#allocation7], 128
    $region29: #{tpu_custom_call.1} parent=1 // pred_fallthru
      _
    // Predicated region
    $region30: #{tpu_custom_call.1} parent=1 // pred_check
      _
    $region31: #{tpu_custom_call.1} parent=1 // pred_check_branch
      %71 = sbr.rel (0) target = $region33
    $region32: #{tpu_custom_call.1} parent=1 // pred_region
      %73 = dma.done [#allocation7], 128
    $region33: #{tpu_custom_call.1} parent=1 // pred_fallthru
      _
    // Predicated region
    $region34: #{tpu_custom_call.1} parent=1 // pred_check
      _
    $region35: #{tpu_custom_call.1} parent=1 // pred_check_branch
      %75 = sbr.rel (0) target = $region37
    $region36: #{tpu_custom_call.1} parent=1 // pred_region
      %77 = dma.done [#allocation10], 256
    $region37: #{tpu_custom_call.1} parent=1 // pred_fallthru
      _
    %v78 = vld [vmem:[#allocation3] sm:$0xff]
    %v79 = vld [vmem:[#allocation6] sm:$0xff]
    %v80 = vand.u32 2147483647, %v78
    %v81 = vand.u32 2147483647, %v79
    %vm82 = vcmp.ge.f32.partialorder %v78, 0.0
    %vm83 = vcmp.ge.f32.partialorder %v79, 0.0
    %vm84 = vmxor %vm82, 1
    %vm85 = vmxor %vm83, 1
    %vm86 = vcmp.ge.f32.partialorder %v80, %v81
    %vm87 = vmxor %vm86, 1
    %vm88 = vmand %vm82, %vm83
    %vm89 = vmand %vm88, %vm86
    %vm90 = vmand %vm88, %vm87
    %vm91 = vmand %vm84, %vm83
    %vm92 = vmand %vm91, %vm87
    %vm93 = vmand %vm91, %vm86
    %vm94 = vmand %vm84, %vm85
    %vm95 = vmand %vm94, %vm86
    %vm96 = vmand %vm94, %vm87
    %vm97 = vmand %vm82, %vm85
    %vm98 = vmand %vm97, %vm87
    %vm99 = vmand %vm97, %vm86
    %v100 = vmul.f32 %v78, %v78
    %v101 = vmul.f32 %v79, %v79
    %v102 = vadd.f32 %v100, %v101
    %vm103 = vcmp.le.f32.partialorder %v102, 0.01
    %vm104 = vcmp.lt.f32.partialorder %v102, 0.0025
    %vm105 = vcmp.ge.f32.partialorder %v102, 0.0025
    %vm106 = vmand %vm105, %vm103
    %vm107 = vcmask 130048
    %108 = vst.msk [vmem:[#allocation2] sm:$0xff] %vm107, 0.0
    %vm109 = vmand %vm89, %vm104
    %v110 = vsel %vm109, 1.0, 0.0
    %111 = vadd.xlane.f32.xlu0 %v110
    %v112 = vpop.xlane.xlu0 %111
    %v113 = vmax.f32 %v112, 1.0
    %v114 = vrcp.pop %v113
    %v115 = vmul.f32 %v113, %v114
    %v116 = vsub.f32 1.0, %v115
    %v117 = vmul.f32 %v114, %v116
    %v118 = vadd.f32 %v114, %v117
    %vm119 = vweird.f32 %v113
    %vm120 = vweird.f32 %v114
    %vm121 = vmor %vm119, %vm120
    %v122 = vsel %vm121, %v114, %v118
    %v123 = vand.u32 2147483647, %v113
    %vm124 = vcmp.eq.f32.partialorder %v123, 8.507059e+37
    %v125 = vand.u32 %v113, 2147483648
    %v126 = vor.u32 1.1754944e-38, %v125
    %v127 = vsel %vm124, %v126, %v122
    %v128 = vld [vmem:[#allocation8] sm:$0xff]
    %v129 = vsel %vm109, %v128, 0.0
    %130 = vadd.xlane.f32.xlu0 %v129
    %v131 = vpop.xlane.xlu0 %130
    %v132 = vmul.f32 %v131, %v127
    %vm133 = vcmask 7168
    %134 = vst.msk [vmem:[#allocation2] sm:$0xff] %vm133, %v132
    %vm135 = vmand %vm89, %vm106
    %v136 = vsel %vm135, 1.0, 0.0
    %137 = vadd.xlane.f32.xlu0 %v136
    %v138 = vpop.xlane.xlu0 %137
    %v139 = vmax.f32 %v138, 1.0
    %v140 = vrcp.pop %v139
    %v141 = vmul.f32 %v139, %v140
    %v142 = vsub.f32 1.0, %v141
    %v143 = vmul.f32 %v140, %v142
    %v144 = vadd.f32 %v140, %v143
    %vm145 = vweird.f32 %v139
    %vm146 = vweird.f32 %v140
    %vm147 = vmor %vm145, %vm146
    %v148 = vsel %vm147, %v140, %v144
    %v149 = vand.u32 2147483647, %v139
    %vm150 = vcmp.eq.f32.partialorder %v149, 8.507059e+37
    %v151 = vand.u32 %v139, 2147483648
    %v152 = vor.u32 1.1754944e-38, %v151
    %v153 = vsel %vm150, %v152, %v148
    %v154 = vld [vmem:[#allocation8] sm:$0xff]
    %v155 = vsel %vm135, %v154, 0.0
    %156 = vadd.xlane.f32.xlu0 %v155
    %v157 = vpop.xlane.xlu0 %156
    %v158 = vmul.f32 %v157, %v153
    %vm159 = vcmask 15368
    %160 = vst.msk [vmem:[#allocation2] sm:$0xff] %vm159, %v158
    %vm161 = vmand %vm90, %vm104
    %v162 = vsel %vm161, 1.0, 0.0
    %163 = vadd.xlane.f32.xlu0 %v162
    %v164 = vpop.xlane.xlu0 %163
    %v165 = vmax.f32 %v164, 1.0
    %v166 = vrcp.pop %v165
    %v167 = vmul.f32 %v165, %v166
    %v168 = vsub.f32 1.0, %v167
    %v169 = vmul.f32 %v166, %v168
    %v170 = vadd.f32 %v166, %v169
    %vm171 = vweird.f32 %v165
    %vm172 = vweird.f32 %v166
    %vm173 = vmor %vm171, %vm172
    %v174 = vsel %vm173, %v166, %v170
    %v175 = vand.u32 2147483647, %v165
    %vm176 = vcmp.eq.f32.partialorder %v175, 8.507059e+37
    %v177 = vand.u32 %v165, 2147483648
    %v178 = vor.u32 1.1754944e-38, %v177
    %v179 = vsel %vm176, %v178, %v174
    %v180 = vld [vmem:[#allocation8] sm:$0xff]
    %v181 = vsel %vm161, %v180, 0.0
    %182 = vadd.xlane.f32.xlu0 %v181
    %v183 = vpop.xlane.xlu0 %182
    %v184 = vmul.f32 %v183, %v179
    %vm185 = vcmask 23568
    %186 = vst.msk [vmem:[#allocation2] sm:$0xff] %vm185, %v184
    %vm187 = vmand %vm90, %vm106
    %v188 = vsel %vm187, 1.0, 0.0
    %189 = vadd.xlane.f32.xlu0 %v188
    %v190 = vpop.xlane.xlu0 %189
    %v191 = vmax.f32 %v190, 1.0
    %v192 = vrcp.pop %v191
    %v193 = vmul.f32 %v191, %v192
    %v194 = vsub.f32 1.0, %v193
    %v195 = vmul.f32 %v192, %v194
    %v196 = vadd.f32 %v192, %v195
    %vm197 = vweird.f32 %v191
    %vm198 = vweird.f32 %v192
    %vm199 = vmor %vm197, %vm198
    %v200 = vsel %vm199, %v192, %v196
    %v201 = vand.u32 2147483647, %v191
    %vm202 = vcmp.eq.f32.partialorder %v201, 8.507059e+37
    %v203 = vand.u32 %v191, 2147483648
    %v204 = vor.u32 1.1754944e-38, %v203
    %v205 = vsel %vm202, %v204, %v200
    %v206 = vld [vmem:[#allocation8] sm:$0xff]
    %v207 = vsel %vm187, %v206, 0.0
    %208 = vadd.xlane.f32.xlu0 %v207
    %v209 = vpop.xlane.xlu0 %208
    %v210 = vmul.f32 %v209, %v205
    %vm211 = vcmask 31768
    %212 = vst.msk [vmem:[#allocation2] sm:$0xff] %vm211, %v210
    %vm213 = vmand %vm92, %vm104
    %v214 = vsel %vm213, 1.0, 0.0
    %215 = vadd.xlane.f32.xlu0 %v214
    %v216 = vpop.xlane.xlu0 %215
    %v217 = vmax.f32 %v216, 1.0
    %v218 = vrcp.pop %v217
    %v219 = vmul.f32 %v217, %v218
    %v220 = vsub.f32 1.0, %v219
    %v221 = vmul.f32 %v218, %v220
    %v222 = vadd.f32 %v218, %v221
    %vm223 = vweird.f32 %v217
    %vm224 = vweird.f32 %v218
    %vm225 = vmor %vm223, %vm224
    %v226 = vsel %vm225, %v218, %v222
    %v227 = vand.u32 2147483647, %v217
    %vm228 = vcmp.eq.f32.partialorder %v227, 8.507059e+37
    %v229 = vand.u32 %v217, 2147483648
    %v230 = vor.u32 1.1754944e-38, %v229
    %v231 = vsel %vm228, %v230, %v226
    %v232 = vld [vmem:[#allocation8] sm:$0xff]
    %v233 = vsel %vm213, %v232, 0.0
    %234 = vadd.xlane.f32.xlu0 %v233
    %v235 = vpop.xlane.xlu0 %234
    %v236 = vmul.f32 %v235, %v231
    %vm237 = vcmask 39968
    %238 = vst.msk [vmem:[#allocation2] sm:$0xff] %vm237, %v236
    %vm239 = vmand %vm92, %vm106
    %v240 = vsel %vm239, 1.0, 0.0
    %241 = vadd.xlane.f32.xlu0 %v240
    %v242 = vpop.xlane.xlu0 %241
    %v243 = vmax.f32 %v242, 1.0
    %v244 = vrcp.pop %v243
    %v245 = vmul.f32 %v243, %v244
    %v246 = vsub.f32 1.0, %v245
    %v247 = vmul.f32 %v244, %v246
    %v248 = vadd.f32 %v244, %v247
    %vm249 = vweird.f32 %v243
    %vm250 = vweird.f32 %v244
    %vm251 = vmor %vm249, %vm250
    %v252 = vsel %vm251, %v244, %v248
    %v253 = vand.u32 2147483647, %v243
    %vm254 = vcmp.eq.f32.partialorder %v253, 8.507059e+37
    %v255 = vand.u32 %v243, 2147483648
    %v256 = vor.u32 1.1754944e-38, %v255
    %v257 = vsel %vm254, %v256, %v252
    %v258 = vld [vmem:[#allocation8] sm:$0xff]
    %v259 = vsel %vm239, %v258, 0.0
    %260 = vadd.xlane.f32.xlu0 %v259
    %v261 = vpop.xlane.xlu0 %260
    %v262 = vmul.f32 %v261, %v257
    %vm263 = vcmask 48168
    %264 = vst.msk [vmem:[#allocation2] sm:$0xff] %vm263, %v262
    %vm265 = vmand %vm93, %vm104
    %v266 = vsel %vm265, 1.0, 0.0
    %267 = vadd.xlane.f32.xlu0 %v266
    %v268 = vpop.xlane.xlu0 %267
    %v269 = vmax.f32 %v268, 1.0
    %v270 = vrcp.pop %v269
    %v271 = vmul.f32 %v269, %v270
    %v272 = vsub.f32 1.0, %v271
    %v273 = vmul.f32 %v270, %v272
    %v274 = vadd.f32 %v270, %v273
    %vm275 = vweird.f32 %v269
    %vm276 = vweird.f32 %v270
    %vm277 = vmor %vm275, %vm276
    %v278 = vsel %vm277, %v270, %v274
    %v279 = vand.u32 2147483647, %v269
    %vm280 = vcmp.eq.f32.partialorder %v279, 8.507059e+37
    %v281 = vand.u32 %v269, 2147483648
    %v282 = vor.u32 1.1754944e-38, %v281
    %v283 = vsel %vm280, %v282, %v278
    %v284 = vld [vmem:[#allocation8] sm:$0xff]
    %v285 = vsel %vm265, %v284, 0.0
    %286 = vadd.xlane.f32.xlu0 %v285
    %v287 = vpop.xlane.xlu0 %286
    %v288 = vmul.f32 %v287, %v283
    %vm289 = vcmask 56368
    %290 = vst.msk [vmem:[#allocation2] sm:$0xff] %vm289, %v288
    %vm291 = vmand %vm93, %vm106
    %v292 = vsel %vm291, 1.0, 0.0
    %293 = vadd.xlane.f32.xlu0 %v292
    %v294 = vpop.xlane.xlu0 %293
    %v295 = vmax.f32 %v294, 1.0
    %v296 = vrcp.pop %v295
    %v297 = vmul.f32 %v295, %v296
    %v298 = vsub.f32 1.0, %v297
    %v299 = vmul.f32 %v296, %v298
    %v300 = vadd.f32 %v296, %v299
    %vm301 = vweird.f32 %v295
    %vm302 = vweird.f32 %v296
    %vm303 = vmor %vm301, %vm302
    %v304 = vsel %vm303, %v296, %v300
    %v305 = vand.u32 2147483647, %v295
    %vm306 = vcmp.eq.f32.partialorder %v305, 8.507059e+37
    %v307 = vand.u32 %v295, 2147483648
    %v308 = vor.u32 1.1754944e-38, %v307
    %v309 = vsel %vm306, %v308, %v304
    %v310 = vld [vmem:[#allocation8] sm:$0xff]
    %v311 = vsel %vm291, %v310, 0.0
    %312 = vadd.xlane.f32.xlu0 %v311
    %v313 = vpop.xlane.xlu0 %312
    %v314 = vmul.f32 %v313, %v309
    %vm315 = vcmask 64568
    %316 = vst.msk [vmem:[#allocation2] sm:$0xff] %vm315, %v314
    %vm317 = vmand %vm95, %vm104
    %v318 = vsel %vm317, 1.0, 0.0
    %319 = vadd.xlane.f32.xlu0 %v318
    %v320 = vpop.xlane.xlu0 %319
    %v321 = vmax.f32 %v320, 1.0
    %v322 = vrcp.pop %v321
    %v323 = vmul.f32 %v321, %v322
    %v324 = vsub.f32 1.0, %v323
    %v325 = vmul.f32 %v322, %v324
    %v326 = vadd.f32 %v322, %v325
    %vm327 = vweird.f32 %v321
    %vm328 = vweird.f32 %v322
    %vm329 = vmor %vm327, %vm328
    %v330 = vsel %vm329, %v322, %v326
    %v331 = vand.u32 2147483647, %v321
    %vm332 = vcmp.eq.f32.partialorder %v331, 8.507059e+37
    %v333 = vand.u32 %v321, 2147483648
    %v334 = vor.u32 1.1754944e-38, %v333
    %v335 = vsel %vm332, %v334, %v330
    %v336 = vld [vmem:[#allocation8] sm:$0xff]
    %v337 = vsel %vm317, %v336, 0.0
    %338 = vadd.xlane.f32.xlu0 %v337
    %v339 = vpop.xlane.xlu0 %338
    %v340 = vmul.f32 %v339, %v335
    %vm341 = vcmask 72768
    %342 = vst.msk [vmem:[#allocation2] sm:$0xff] %vm341, %v340
    %vm343 = vmand %vm95, %vm106
    %v344 = vsel %vm343, 1.0, 0.0
    %345 = vadd.xlane.f32.xlu0 %v344
    %v346 = vpop.xlane.xlu0 %345
    %v347 = vmax.f32 %v346, 1.0
    %v348 = vrcp.pop %v347
    %v349 = vmul.f32 %v347, %v348
    %v350 = vsub.f32 1.0, %v349
    %v351 = vmul.f32 %v348, %v350
    %v352 = vadd.f32 %v348, %v351
    %vm353 = vweird.f32 %v347
    %vm354 = vweird.f32 %v348
    %vm355 = vmor %vm353, %vm354
    %v356 = vsel %vm355, %v348, %v352
    %v357 = vand.u32 2147483647, %v347
    %vm358 = vcmp.eq.f32.partialorder %v357, 8.507059e+37
    %v359 = vand.u32 %v347, 2147483648
    %v360 = vor.u32 1.1754944e-38, %v359
    %v361 = vsel %vm358, %v360, %v356
    %v362 = vld [vmem:[#allocation8] sm:$0xff]
    %v363 = vsel %vm343, %v362, 0.0
    %364 = vadd.xlane.f32.xlu0 %v363
    %v365 = vpop.xlane.xlu0 %364
    %v366 = vmul.f32 %v365, %v361
    %vm367 = vcmask 80968
    %368 = vst.msk [vmem:[#allocation2] sm:$0xff] %vm367, %v366
    %vm369 = vmand %vm96, %vm104
    %v370 = vsel %vm369, 1.0, 0.0
    %371 = vadd.xlane.f32.xlu0 %v370
    %v372 = vpop.xlane.xlu0 %371
    %v373 = vmax.f32 %v372, 1.0
    %v374 = vrcp.pop %v373
    %v375 = vmul.f32 %v373, %v374
    %v376 = vsub.f32 1.0, %v375
    %v377 = vmul.f32 %v374, %v376
    %v378 = vadd.f32 %v374, %v377
    %vm379 = vweird.f32 %v373
    %vm380 = vweird.f32 %v374
    %vm381 = vmor %vm379, %vm380
    %v382 = vsel %vm381, %v374, %v378
    %v383 = vand.u32 2147483647, %v373
    %vm384 = vcmp.eq.f32.partialorder %v383, 8.507059e+37
    %v385 = vand.u32 %v373, 2147483648
    %v386 = vor.u32 1.1754944e-38, %v385
    %v387 = vsel %vm384, %v386, %v382
    %v388 = vld [vmem:[#allocation8] sm:$0xff]
    %v389 = vsel %vm369, %v388, 0.0
    %390 = vadd.xlane.f32.xlu0 %v389
    %v391 = vpop.xlane.xlu0 %390
    %v392 = vmul.f32 %v391, %v387
    %vm393 = vcmask 89168
    %394 = vst.msk [vmem:[#allocation2] sm:$0xff] %vm393, %v392
    %vm395 = vmand %vm96, %vm106
    %v396 = vsel %vm395, 1.0, 0.0
    %397 = vadd.xlane.f32.xlu0 %v396
    %v398 = vpop.xlane.xlu0 %397
    %v399 = vmax.f32 %v398, 1.0
    %v400 = vrcp.pop %v399
    %v401 = vmul.f32 %v399, %v400
    %v402 = vsub.f32 1.0, %v401
    %v403 = vmul.f32 %v400, %v402
    %v404 = vadd.f32 %v400, %v403
    %vm405 = vweird.f32 %v399
    %vm406 = vweird.f32 %v400
    %vm407 = vmor %vm405, %vm406
    %v408 = vsel %vm407, %v400, %v404
    %v409 = vand.u32 2147483647, %v399
    %vm410 = vcmp.eq.f32.partialorder %v409, 8.507059e+37
    %v411 = vand.u32 %v399, 2147483648
    %v412 = vor.u32 1.1754944e-38, %v411
    %v413 = vsel %vm410, %v412, %v408
    %v414 = vld [vmem:[#allocation8] sm:$0xff]
    %v415 = vsel %vm395, %v414, 0.0
    %416 = vadd.xlane.f32.xlu0 %v415
    %v417 = vpop.xlane.xlu0 %416
    %v418 = vmul.f32 %v417, %v413
    %vm419 = vcmask 97368
    %420 = vst.msk [vmem:[#allocation2] sm:$0xff] %vm419, %v418
    %vm421 = vmand %vm98, %vm104
    %v422 = vsel %vm421, 1.0, 0.0
    %423 = vadd.xlane.f32.xlu0 %v422
    %v424 = vpop.xlane.xlu0 %423
    %v425 = vmax.f32 %v424, 1.0
    %v426 = vrcp.pop %v425
    %v427 = vmul.f32 %v425, %v426
    %v428 = vsub.f32 1.0, %v427
    %v429 = vmul.f32 %v426, %v428
    %v430 = vadd.f32 %v426, %v429
    %vm431 = vweird.f32 %v425
    %vm432 = vweird.f32 %v426
    %vm433 = vmor %vm431, %vm432
    %v434 = vsel %vm433, %v426, %v430
    %v435 = vand.u32 2147483647, %v425
    %vm436 = vcmp.eq.f32.partialorder %v435, 8.507059e+37
    %v437 = vand.u32 %v425, 2147483648
    %v438 = vor.u32 1.1754944e-38, %v437
    %v439 = vsel %vm436, %v438, %v434
    %v440 = vld [vmem:[#allocation8] sm:$0xff]
    %v441 = vsel %vm421, %v440, 0.0
    %442 = vadd.xlane.f32.xlu0 %v441
    %v443 = vpop.xlane.xlu0 %442
    %v444 = vmul.f32 %v443, %v439
    %vm445 = vcmask 105568
    %446 = vst.msk [vmem:[#allocation2] sm:$0xff] %vm445, %v444
    %vm447 = vmand %vm98, %vm106
    %v448 = vsel %vm447, 1.0, 0.0
    %449 = vadd.xlane.f32.xlu0 %v448
    %v450 = vpop.xlane.xlu0 %449
    %v451 = vmax.f32 %v450, 1.0
    %v452 = vrcp.pop %v451
    %v453 = vmul.f32 %v451, %v452
    %v454 = vsub.f32 1.0, %v453
    %v455 = vmul.f32 %v452, %v454
    %v456 = vadd.f32 %v452, %v455
    %vm457 = vweird.f32 %v451
    %vm458 = vweird.f32 %v452
    %vm459 = vmor %vm457, %vm458
    %v460 = vsel %vm459, %v452, %v456
    %v461 = vand.u32 2147483647, %v451
    %vm462 = vcmp.eq.f32.partialorder %v461, 8.507059e+37
    %v463 = vand.u32 %v451, 2147483648
    %v464 = vor.u32 1.1754944e-38, %v463
    %v465 = vsel %vm462, %v464, %v460
    %v466 = vld [vmem:[#allocation8] sm:$0xff]
    %v467 = vsel %vm447, %v466, 0.0
    %468 = vadd.xlane.f32.xlu0 %v467
    %v469 = vpop.xlane.xlu0 %468
    %v470 = vmul.f32 %v469, %v465
    %vm471 = vcmask 113768
    %472 = vst.msk [vmem:[#allocation2] sm:$0xff] %vm471, %v470
    %vm473 = vmand %vm99, %vm104
    %v474 = vsel %vm473, 1.0, 0.0
    %475 = vadd.xlane.f32.xlu0 %v474
    %v476 = vpop.xlane.xlu0 %475
    %v477 = vmax.f32 %v476, 1.0
    %v478 = vrcp.pop %v477
    %v479 = vmul.f32 %v477, %v478
    %v480 = vsub.f32 1.0, %v479
    %v481 = vmul.f32 %v478, %v480
    %v482 = vadd.f32 %v478, %v481
    %vm483 = vweird.f32 %v477
    %vm484 = vweird.f32 %v478
    %vm485 = vmor %vm483, %vm484
    %v486 = vsel %vm485, %v478, %v482
    %v487 = vand.u32 2147483647, %v477
    %vm488 = vcmp.eq.f32.partialorder %v487, 8.507059e+37
    %v489 = vand.u32 %v477, 2147483648
    %v490 = vor.u32 1.1754944e-38, %v489
    %v491 = vsel %vm488, %v490, %v486
    %v492 = vld [vmem:[#allocation8] sm:$0xff]
    %v493 = vsel %vm473, %v492, 0.0
    %494 = vadd.xlane.f32.xlu0 %v493
    %v495 = vpop.xlane.xlu0 %494
    %v496 = vmul.f32 %v495, %v491
    %vm497 = vcmask 121968
    %498 = vst.msk [vmem:[#allocation2] sm:$0xff] %vm497, %v496
    %vm499 = vmand %vm99, %vm106
    %v500 = vsel %vm499, 1.0, 0.0
    %501 = vadd.xlane.f32.xlu0 %v500
    %v502 = vpop.xlane.xlu0 %501
    %v503 = vmax.f32 %v502, 1.0
    %v504 = vrcp.pop %v503
    %v505 = vmul.f32 %v503, %v504
    %v506 = vsub.f32 1.0, %v505
    %v507 = vmul.f32 %v504, %v506
    %v508 = vadd.f32 %v504, %v507
    %vm509 = vweird.f32 %v503
    %vm510 = vweird.f32 %v504
    %vm511 = vmor %vm509, %vm510
    %v512 = vsel %vm511, %v504, %v508
    %v513 = vand.u32 2147483647, %v503
    %vm514 = vcmp.eq.f32.partialorder %v513, 8.507059e+37
    %v515 = vand.u32 %v503, 2147483648
    %v516 = vor.u32 1.1754944e-38, %v515
    %v517 = vsel %vm514, %v516, %v512
    %v518 = vld [vmem:[#allocation8] sm:$0xff]
    %v519 = vsel %vm499, %v518, 0.0
    %520 = vadd.xlane.f32.xlu0 %v519
    %v521 = vpop.xlane.xlu0 %520
    %v522 = vmul.f32 %v521, %v517
    %vm523 = vcmask 130168
    %524 = vst.msk [vmem:[#allocation2] sm:$0xff] %vm523, %v522
    %v525 = vld [vmem:[#allocation2] sm:$0xff]
    %v526 = vld [vmem:[#allocation9] sm:$0xff]
    %v527 = vld [vmem:[#allocation9 + $0x8] sm:$0xff]
    %v528 = vld [vmem:[%s4] sm:$0x1]
    %v530 = vperm.slane %v528, 0
    %v533 = vsel %vm107, %v525, 0
    %535 = vmatpush.msra.mxu0 0.0
    %536 = vmatpush.msra.mxu0 0.0
    %537 = vmatpush.msra.mxu0 0.0
    %538 = vmatpush.msra.mxu0 0.0
    %539 = vmatpush.msra.mxu0 0.0
    %540 = vmatpush.msra.mxu0 0.0
    %541 = vmatpush.msra.mxu0 0.0
    %542 = vmatpush.msra.mxu0 0.0
    %543 = vmatpush.msra.mxu0 0.0
    %544 = vmatpush.msra.mxu0 0.0
    %545 = vmatpush.msra.mxu0 0.0
    %546 = vmatpush.msra.mxu0 0.0
    %547 = vmatpush.msra.mxu0 0.0
    %548 = vmatpush.msra.mxu0 0.0
    %549 = vmatpush.msra.mxu0 %v527
    %550 = vmatpush.msra.mxu0 %v526
    %551 = vmatmul.f32.gmra.mxu0 %v533
    %v552 = vpop.f32.mrf.mxu0
    %v553 = vadd.f32 %v530, %v552
    %554 = vdwg.mxu0
    %555 = vst [vmem:[#allocation11] sm:$0xff] %v553
    // Predicated region
    $region38: #{tpu_custom_call.1} parent=1 // pred_check
      _
    $region39: #{tpu_custom_call.1} parent=1 // pred_check_branch
      %557 = sbr.rel (0) target = $region41
    $region40: #{tpu_custom_call.1} parent=1 // pred_region
      %559 = vsyncadd [#allocation5], 0
      %s561 = sshll.u32 [#allocation11], 4
      %s562 = int_to_ptr.vmem [resolvable:$true] %s561
      %s563 = sshll.u32 %s5, 4
      %s564 = int_to_ptr.hbm [resolvable:$true] %s563
      %566 = dma.vmem_to_hbm [thread:$0]  %s562, 128, %s564, [#allocation5]
    $region41: #{tpu_custom_call.1} parent=1 // pred_fallthru
      _
    // Predicated region
    $region42: #{tpu_custom_call.1} parent=1 // pred_check
      _
    $region43: #{tpu_custom_call.1} parent=1 // pred_check_branch
      %568 = sbr.rel (0) target = $region45
    $region44: #{tpu_custom_call.1} parent=1 // pred_region
      %570 = dma.done [#allocation5], 128
    $region45: #{tpu_custom_call.1} parent=1 // pred_fallthru
      _
    %571 = vsyncpa [#allocation4], 1
    %572 = vsyncpa [#allocation7], 1
    %573 = vsyncpa [#allocation10], 1
    %574 = vsyncpa [#allocation5], 1

</llo_original>
